<compile_context>
chip_gen: v5e
topology: v5e:2x2
jax: 0.10.0
libtpu: 0.0.40
codegen_flags: <defaults>
</compile_context>

<pallas_src>
import functools

import jax
import jax.numpy as jnp
from jax.experimental import pallas as pl
from jax.experimental.pallas import tpu as pltpu


_LANES = 128


def _round_up(v, m):
    return ((v + m - 1) // m) * m


def _cdiv(a, b):
    return -(-a // b)


def _vmem_limit_bytes():
    """Per-generation VMEM limit: ~3/4 of physical VMEM, capped at 96 MiB.

    v5e/v6e (128 MiB physical) -> 96 MiB; v7x (64 MiB physical) -> 48 MiB.
    Falls back to the conservative 48 MiB if the hardware query is unavailable.
    """
    cap = 64 * 1024 * 1024
    try:
        info = pltpu.get_tpu_info()
        cap_q = getattr(info, "vmem_capacity_bytes", None)
        if cap_q:
            cap = int(cap_q)
    except Exception:
        pass
    return int(min((cap * 3) // 4, 96 * 1024 * 1024))


def _conv3x3_kernel(x_ref, w_ref, b_ref, o_ref, x3_ref, *, wp):
    """One grid step: tn flattened, padded images -> channel-major conv output.

    x_ref:  [tn, C_in, Lin]      bf16; per image, the zero-padded (Hp, Wp) plane flattened
                                 row-major into Lin >= Hp*Wp (+ tap slack) elements.
    w_ref:  [C_out_p, 9*C_in]    bf16 weights, K ordered as (kh, kw, c_in).
    b_ref:  [C_out_p, 1]         f32 bias.
    o_ref:  [tn, C_out_p, Lout]  output; position p = h*Wp + w (the garbage columns w >= W and
                                 p >= H*Wp are sliced off by the wrapper).
    x3_ref: [tn, 9*C_in, Lout]   bf16 VMEM scratch: the folded-K im2col RHS.
    """
    tn = x_ref.shape[0]
    c_in = x_ref.shape[1]
    l_out = o_ref.shape[-1]

    x = x_ref[...]                                    # single load of the image block
    # Fold the 9 taps into the contraction dim: tap (kh, kw) at output position p is the
    # lane-shifted slice starting at d = kh*Wp + kw of the flattened padded image.
    for kh in range(3):
        for kw in range(3):
            d = kh * wp + kw
            t = kh * 3 + kw
            x3_ref[:, t * c_in:(t + 1) * c_in, :] = x[:, :, d:d + l_out]

    w = w_ref[...]                                    # [C_out_p, K] bf16, VMEM-resident
    b = b_ref[...]                                    # [C_out_p, 1]  f32
    for i in range(tn):                               # tn is small & static -> unrolled
        acc = jnp.dot(w, x3_ref[i],                   # one dot per image, K = 9*C_in
                      preferred_element_type=jnp.float32)
        o_ref[i] = (acc + b).astype(o_ref.dtype)      # f32 bias epilogue, lane-dense store


def seq2ann_conv_forward(x_seq, weight, bias, *, block_images=8):
    """Seq2ANN forward with inner module Conv2d(C_in, C_out, 3, padding=1, bias=True).

    x_seq:  [T, B, C_in, H, W]   (PyTorch NCHW per time step)
    weight: [C_out, C_in, 3, 3]  (PyTorch layout)
    bias:   [C_out]
    returns [T, B, C_out, H, W]
    """
    T, B, C_in, H, W = x_seq.shape
    C_out = weight.shape[0]
    N = T * B
    Hp, Wp = H + 2, W + 2
    out_dtype = x_seq.dtype
    out_isz = jnp.dtype(out_dtype).itemsize

    # Lane-dense flattened-spatial geometry.
    l_out = _round_up(H * Wp, _LANES)            # output positions per image (p = h*Wp + w)
    d_max = 2 * Wp + 2                           # largest tap offset (kh = kw = 2)
    l_in = _round_up(l_out + d_max, _LANES)      # padded-image flat length incl. tap slack
    K = 9 * C_in
    C_out_p = max(8, _round_up(C_out, 8))        # pad channels only to the 8-sublane granule

    # --- VMEM-budgeted tile size (counts double-buffered in/out blocks, scratch, temporaries) ---
    vmem_limit = _vmem_limit_bytes()
    b_in = C_in * l_in * 2                       # bf16 input bytes / image
    b_out = C_out_p * l_out * out_isz            # output bytes / image
    b_x3 = K * l_out * 2                         # folded-K im2col scratch bytes / image
    # 2x in + 2x out (pipeline double-buffers) + x value load + scratch + ~1x slice temporaries
    per_img = 3 * b_in + 2 * b_out + 2 * b_x3
    fixed = 2 * (C_out_p * K * 2 + C_out_p * 4) + (2 << 20)   # weights/bias buffers + slack
    tn = max(1, min(block_images, N, (vmem_limit - fixed) // per_img))
    # TODO(synk): for very large H*W where a single image exceeds the budget, additionally tile
    #             the flattened spatial axis (with a d_max halo) instead of relying on tn=1.

    n_blocks = _cdiv(N, tn)
    # v7x megacore: keep an even number (>= 2) of image blocks so the "parallel" grid axis
    # splits evenly across the two TensorCores (harmless on single-core v5e/v6e).
    if N >= 2 and (n_blocks < 2 or n_blocks % 2 != 0):
        n_blocks = max(2, n_blocks + (n_blocks % 2))
        tn = _cdiv(N, n_blocks)
    N_pad = n_blocks * tn

    # --- layout glue (NO transposes): merge (T, B), cast bf16, zero-pad, flatten spatial ---
    x = x_seq.reshape(N, C_in, H, W).astype(jnp.bfloat16)
    x = jnp.pad(x, ((0, N_pad - N), (0, 0), (1, 1), (1, 1)))     # image-count + spatial pad
    x = x.reshape(N_pad, C_in, Hp * Wp)
    x = jnp.pad(x, ((0, 0), (0, 0), (0, l_in - Hp * Wp)))        # tap slack / lane tail (zeros)

    # weight [C_out, C_in, 3, 3] -> [C_out_p, 9*C_in] with K ordered (kh, kw, c_in)
    w2 = weight.transpose(0, 2, 3, 1).reshape(C_out, K)
    w2 = jnp.pad(w2, ((0, C_out_p - C_out), (0, 0))).astype(jnp.bfloat16)
    b2 = jnp.pad(bias.astype(jnp.float32), (0, C_out_p - C_out)).reshape(C_out_p, 1)

    flops = 2 * N * H * W * K * C_out            # true conv MACs (channel padding excluded)
    bytes_accessed = (N_pad * C_in * l_in * 2
                      + C_out_p * K * 2 + C_out_p * 4
                      + N_pad * C_out_p * l_out * out_isz)

    kernel = functools.partial(_conv3x3_kernel, wp=Wp)
    out = pl.pallas_call(
        kernel,
        out_shape=jax.ShapeDtypeStruct((N_pad, C_out_p, l_out), out_dtype),
        grid_spec=pltpu.PrefetchScalarGridSpec(
            num_scalar_prefetch=0,
            grid=(n_blocks,),
            in_specs=[
                pl.BlockSpec((tn, C_in, l_in), lambda i: (i, 0, 0)),   # image block
                # NOTE: weights/bias are sub-KiB here, so default double-buffering of these
                #       constant-index blocks is noise; pl.Buffered(1) would shave it further.
                pl.BlockSpec((C_out_p, K), lambda i: (0, 0)),          # weights, resident
                pl.BlockSpec((C_out_p, 1), lambda i: (0, 0)),          # bias, resident
            ],
            out_specs=pl.BlockSpec((tn, C_out_p, l_out), lambda i: (i, 0, 0)),
            scratch_shapes=[pltpu.VMEM((tn, K, l_out), jnp.bfloat16)],  # folded-K im2col RHS
        ),
        compiler_params=pltpu.CompilerParams(
            dimension_semantics=("parallel",),       # v7x: shard image blocks across 2 TCs
            vmem_limit_bytes=vmem_limit,             # 96 MiB on v5e/v6e, 48 MiB on v7x
        ),
        cost_estimate=pl.CostEstimate(
            flops=int(flops), transcendentals=0, bytes_accessed=int(bytes_accessed)),
    )(x, w2, b2)

    # --- glue back: channel-major output is already NCHW-ordered; just slice off padding ---
    y = out[:N, :C_out, :H * Wp].reshape(N, C_out, H, Wp)[:, :, :, :W]
    return y.reshape(T, B, C_out, H, W)


if __name__ == "__main__":
    key = jax.random.PRNGKey(0)
    k_x, k_w, k_b = jax.random.split(key, 3)

    # Small shapes implied by the forward: x_seq is [T, B, C, H, W].
    T, B, C_in, C_out, H, W = 3, 2, 4, 8, 8, 8

    x_seq = jax.random.normal(k_x, (T, B, C_in, H, W), dtype=jnp.float32)
    weight = jax.random.normal(k_w, (C_out, C_in, 3, 3), dtype=jnp.float32) * 0.1
    bias = jax.random.normal(k_b, (C_out,), dtype=jnp.float32) * 0.1

    # block_images=4 -> tn=4, 2 (even) grid blocks, and exercises the image-padding path
    # (N = 6 -> N_pad = 8).
    y_seq = seq2ann_conv_forward(x_seq, weight, bias, block_images=4)
    y_seq = jax.block_until_ready(y_seq)

    # Silent correctness check against XLA's conv (same semantics as PyTorch Conv2d, padding=1).
    x_flat = x_seq.reshape(T * B, C_in, H, W)
    ref = jax.lax.conv_general_dilated(
        x_flat, weight, window_strides=(1, 1), padding=((1, 1), (1, 1)),
        dimension_numbers=("NCHW", "OIHW", "NCHW"),
    ) + bias.reshape(1, C_out, 1, 1)
    ref = ref.reshape(T, B, C_out, H, W)
    assert y_seq.shape == (T, B, C_out, H, W)
    # bf16 inputs/weights on the MXU with f32 accumulation -> ~1e-3-level error vs all-f32 ref.
    assert jnp.allclose(y_seq, ref, atol=3e-2, rtol=3e-2)

    print("KERNEL_OK")
</pallas_src>

<mosaic_0001>
module attributes {stable_mosaic.version = 11 : i64} {
  func.func @_conv3x3_kernel(%arg0: i32, %arg1: memref<4x4x256xbf16, #tpu.memory_space<vmem>>, %arg2: memref<8x36xbf16, #tpu.memory_space<vmem>>, %arg3: memref<8x1xf32, #tpu.memory_space<vmem>>, %arg4: memref<4x8x128xf32, #tpu.memory_space<vmem>>, %arg5: memref<4x36x128xbf16, #tpu.memory_space<vmem>>) attributes {dimension_semantics = [#tpu.dimension_semantics<parallel>], iteration_bounds = array<i64: 2>, scalar_prefetch = 0 : i64, scratch_operands = 1 : i64, tpu.core_type = #tpu.core_type<tc>, window_params = [{transform_indices = @transform_0, window_bounds = array<i64: 4, 4, 256>}, {pipeline_mode = #tpu.pipeline_mode<synchronous>, transform_indices = @transform_1, window_bounds = array<i64: 8, 36>}, {pipeline_mode = #tpu.pipeline_mode<synchronous>, transform_indices = @transform_2, window_bounds = array<i64: 8, 1>}, {transform_indices = @transform_3, window_bounds = array<i64: 4, 8, 128>}]} {
    %c0 = arith.constant 0 : index
    %c0_0 = arith.constant 0 : index
    %c0_1 = arith.constant 0 : index
    %0 = vector.load %arg1[%c0, %c0_0, %c0_1] : memref<4x4x256xbf16, #tpu.memory_space<vmem>>, vector<4x4x256xbf16>
    %1 = vector.extract_strided_slice %0 {offsets = [0, 0, 0], sizes = [4, 4, 128], strides = [1, 1, 1]} : vector<4x4x256xbf16> to vector<4x4x128xbf16>
    %c0_2 = arith.constant 0 : index
    %c0_3 = arith.constant 0 : index
    %c0_4 = arith.constant 0 : index
    %2 = vector.load %arg5[%c0_2, %c0_3, %c0_4] : memref<4x36x128xbf16, #tpu.memory_space<vmem>>, vector<4x4x128xbf16>
    tpu.vector_store %arg5[%c0_2, %c0_3, %c0_4], %1 {strides = array<i32>} : memref<4x36x128xbf16, #tpu.memory_space<vmem>>, vector<4x4x128xbf16>,
    %3 = vector.extract_strided_slice %0 {offsets = [0, 0, 1], sizes = [4, 4, 128], strides = [1, 1, 1]} : vector<4x4x256xbf16> to vector<4x4x128xbf16>
    %c0_5 = arith.constant 0 : index
    %c4 = arith.constant 4 : index
    %c0_6 = arith.constant 0 : index
    %4 = vector.load %arg5[%c0_5, %c4, %c0_6] : memref<4x36x128xbf16, #tpu.memory_space<vmem>>, vector<4x4x128xbf16>
    tpu.vector_store %arg5[%c0_5, %c4, %c0_6], %3 {strides = array<i32>} : memref<4x36x128xbf16, #tpu.memory_space<vmem>>, vector<4x4x128xbf16>,
    %5 = vector.extract_strided_slice %0 {offsets = [0, 0, 2], sizes = [4, 4, 128], strides = [1, 1, 1]} : vector<4x4x256xbf16> to vector<4x4x128xbf16>
    %c0_7 = arith.constant 0 : index
    %c8 = arith.constant 8 : index
    %c0_8 = arith.constant 0 : index
    %6 = vector.load %arg5[%c0_7, %c8, %c0_8] : memref<4x36x128xbf16, #tpu.memory_space<vmem>>, vector<4x4x128xbf16>
    tpu.vector_store %arg5[%c0_7, %c8, %c0_8], %5 {strides = array<i32>} : memref<4x36x128xbf16, #tpu.memory_space<vmem>>, vector<4x4x128xbf16>,
    %7 = vector.extract_strided_slice %0 {offsets = [0, 0, 10], sizes = [4, 4, 128], strides = [1, 1, 1]} : vector<4x4x256xbf16> to vector<4x4x128xbf16>
    %c0_9 = arith.constant 0 : index
    %c12 = arith.constant 12 : index
    %c0_10 = arith.constant 0 : index
    %8 = vector.load %arg5[%c0_9, %c12, %c0_10] : memref<4x36x128xbf16, #tpu.memory_space<vmem>>, vector<4x4x128xbf16>
    tpu.vector_store %arg5[%c0_9, %c12, %c0_10], %7 {strides = array<i32>} : memref<4x36x128xbf16, #tpu.memory_space<vmem>>, vector<4x4x128xbf16>,
    %9 = vector.extract_strided_slice %0 {offsets = [0, 0, 11], sizes = [4, 4, 128], strides = [1, 1, 1]} : vector<4x4x256xbf16> to vector<4x4x128xbf16>
    %c0_11 = arith.constant 0 : index
    %c16 = arith.constant 16 : index
    %c0_12 = arith.constant 0 : index
    %10 = vector.load %arg5[%c0_11, %c16, %c0_12] : memref<4x36x128xbf16, #tpu.memory_space<vmem>>, vector<4x4x128xbf16>
    tpu.vector_store %arg5[%c0_11, %c16, %c0_12], %9 {strides = array<i32>} : memref<4x36x128xbf16, #tpu.memory_space<vmem>>, vector<4x4x128xbf16>,
    %11 = vector.extract_strided_slice %0 {offsets = [0, 0, 12], sizes = [4, 4, 128], strides = [1, 1, 1]} : vector<4x4x256xbf16> to vector<4x4x128xbf16>
    %c0_13 = arith.constant 0 : index
    %c20 = arith.constant 20 : index
    %c0_14 = arith.constant 0 : index
    %12 = vector.load %arg5[%c0_13, %c20, %c0_14] : memref<4x36x128xbf16, #tpu.memory_space<vmem>>, vector<4x4x128xbf16>
    tpu.vector_store %arg5[%c0_13, %c20, %c0_14], %11 {strides = array<i32>} : memref<4x36x128xbf16, #tpu.memory_space<vmem>>, vector<4x4x128xbf16>,
    %13 = vector.extract_strided_slice %0 {offsets = [0, 0, 20], sizes = [4, 4, 128], strides = [1, 1, 1]} : vector<4x4x256xbf16> to vector<4x4x128xbf16>
    %c0_15 = arith.constant 0 : index
    %c24 = arith.constant 24 : index
    %c0_16 = arith.constant 0 : index
    %14 = vector.load %arg5[%c0_15, %c24, %c0_16] : memref<4x36x128xbf16, #tpu.memory_space<vmem>>, vector<4x4x128xbf16>
    tpu.vector_store %arg5[%c0_15, %c24, %c0_16], %13 {strides = array<i32>} : memref<4x36x128xbf16, #tpu.memory_space<vmem>>, vector<4x4x128xbf16>,
    %15 = vector.extract_strided_slice %0 {offsets = [0, 0, 21], sizes = [4, 4, 128], strides = [1, 1, 1]} : vector<4x4x256xbf16> to vector<4x4x128xbf16>
    %c0_17 = arith.constant 0 : index
    %c28 = arith.constant 28 : index
    %c0_18 = arith.constant 0 : index
    %16 = vector.load %arg5[%c0_17, %c28, %c0_18] : memref<4x36x128xbf16, #tpu.memory_space<vmem>>, vector<4x4x128xbf16>
    tpu.vector_store %arg5[%c0_17, %c28, %c0_18], %15 {strides = array<i32>} : memref<4x36x128xbf16, #tpu.memory_space<vmem>>, vector<4x4x128xbf16>,
    %17 = vector.extract_strided_slice %0 {offsets = [0, 0, 22], sizes = [4, 4, 128], strides = [1, 1, 1]} : vector<4x4x256xbf16> to vector<4x4x128xbf16>
    %c0_19 = arith.constant 0 : index
    %c32 = arith.constant 32 : index
    %c0_20 = arith.constant 0 : index
    %18 = vector.load %arg5[%c0_19, %c32, %c0_20] : memref<4x36x128xbf16, #tpu.memory_space<vmem>>, vector<4x4x128xbf16>
    tpu.vector_store %arg5[%c0_19, %c32, %c0_20], %17 {strides = array<i32>} : memref<4x36x128xbf16, #tpu.memory_space<vmem>>, vector<4x4x128xbf16>,
    %c0_21 = arith.constant 0 : index
    %c0_22 = arith.constant 0 : index
    %19 = vector.load %arg2[%c0_21, %c0_22] : memref<8x36xbf16, #tpu.memory_space<vmem>>, vector<8x36xbf16>
    %c0_23 = arith.constant 0 : index
    %c0_24 = arith.constant 0 : index
    %20 = vector.load %arg3[%c0_23, %c0_24] : memref<8x1xf32, #tpu.memory_space<vmem>>, vector<8x1xf32>
    %c0_25 = arith.constant 0 : index
    %c0_26 = arith.constant 0 : index
    %c0_27 = arith.constant 0 : index
    %21 = vector.load %arg5[%c0_25, %c0_26, %c0_27] : memref<4x36x128xbf16, #tpu.memory_space<vmem>>, vector<1x36x128xbf16>
    %22 = vector.shape_cast %21 : vector<1x36x128xbf16> to vector<36x128xbf16>
    %cst = arith.constant dense<0.000000e+00> : vector<8x128xf32>
    %23 = tpu.matmul %19, %22, %cst {dimension_numbers = #tpu.dot_dimension_numbers<[1], [0], [0], [1], [0, 0, 1, 1], [], []>} : vector<8x36xbf16>, vector<36x128xbf16>, vector<8x128xf32> -> vector<8x128xf32>
    %24 = vector.broadcast %20 : vector<8x1xf32> to vector<8x128xf32>
    %25 = arith.addf %23, %24 : vector<8x128xf32>
    %c0_28 = arith.constant 0 : index
    %c0_29 = arith.constant 0 : index
    %c0_30 = arith.constant 0 : index
    %26 = vector.load %arg4[%c0_28, %c0_29, %c0_30] : memref<4x8x128xf32, #tpu.memory_space<vmem>>, vector<1x8x128xf32>
    %27 = vector.shape_cast %26 : vector<1x8x128xf32> to vector<8x128xf32>
    %28 = vector.shape_cast %25 : vector<8x128xf32> to vector<1x8x128xf32>
    tpu.vector_store %arg4[%c0_28, %c0_29, %c0_30], %28 {strides = array<i32>} : memref<4x8x128xf32, #tpu.memory_space<vmem>>, vector<1x8x128xf32>,
    %c1 = arith.constant 1 : index
    %c0_31 = arith.constant 0 : index
    %c0_32 = arith.constant 0 : index
    %29 = vector.load %arg5[%c1, %c0_31, %c0_32] : memref<4x36x128xbf16, #tpu.memory_space<vmem>>, vector<1x36x128xbf16>
    %30 = vector.shape_cast %29 : vector<1x36x128xbf16> to vector<36x128xbf16>
    %cst_33 = arith.constant dense<0.000000e+00> : vector<8x128xf32>
    %31 = tpu.matmul %19, %30, %cst_33 {dimension_numbers = #tpu.dot_dimension_numbers<[1], [0], [0], [1], [0, 0, 1, 1], [], []>} : vector<8x36xbf16>, vector<36x128xbf16>, vector<8x128xf32> -> vector<8x128xf32>
    %32 = vector.broadcast %20 : vector<8x1xf32> to vector<8x128xf32>
    %33 = arith.addf %31, %32 : vector<8x128xf32>
    %c1_34 = arith.constant 1 : index
    %c0_35 = arith.constant 0 : index
    %c0_36 = arith.constant 0 : index
    %34 = vector.load %arg4[%c1_34, %c0_35, %c0_36] : memref<4x8x128xf32, #tpu.memory_space<vmem>>, vector<1x8x128xf32>
    %35 = vector.shape_cast %34 : vector<1x8x128xf32> to vector<8x128xf32>
    %36 = vector.shape_cast %33 : vector<8x128xf32> to vector<1x8x128xf32>
    tpu.vector_store %arg4[%c1_34, %c0_35, %c0_36], %36 {strides = array<i32>} : memref<4x8x128xf32, #tpu.memory_space<vmem>>, vector<1x8x128xf32>,
    %c2 = arith.constant 2 : index
    %c0_37 = arith.constant 0 : index
    %c0_38 = arith.constant 0 : index
    %37 = vector.load %arg5[%c2, %c0_37, %c0_38] : memref<4x36x128xbf16, #tpu.memory_space<vmem>>, vector<1x36x128xbf16>
    %38 = vector.shape_cast %37 : vector<1x36x128xbf16> to vector<36x128xbf16>
    %cst_39 = arith.constant dense<0.000000e+00> : vector<8x128xf32>
    %39 = tpu.matmul %19, %38, %cst_39 {dimension_numbers = #tpu.dot_dimension_numbers<[1], [0], [0], [1], [0, 0, 1, 1], [], []>} : vector<8x36xbf16>, vector<36x128xbf16>, vector<8x128xf32> -> vector<8x128xf32>
    %40 = vector.broadcast %20 : vector<8x1xf32> to vector<8x128xf32>
    %41 = arith.addf %39, %40 : vector<8x128xf32>
    %c2_40 = arith.constant 2 : index
    %c0_41 = arith.constant 0 : index
    %c0_42 = arith.constant 0 : index
    %42 = vector.load %arg4[%c2_40, %c0_41, %c0_42] : memref<4x8x128xf32, #tpu.memory_space<vmem>>, vector<1x8x128xf32>
    %43 = vector.shape_cast %42 : vector<1x8x128xf32> to vector<8x128xf32>
    %44 = vector.shape_cast %41 : vector<8x128xf32> to vector<1x8x128xf32>
    tpu.vector_store %arg4[%c2_40, %c0_41, %c0_42], %44 {strides = array<i32>} : memref<4x8x128xf32, #tpu.memory_space<vmem>>, vector<1x8x128xf32>,
    %c3 = arith.constant 3 : index
    %c0_43 = arith.constant 0 : index
    %c0_44 = arith.constant 0 : index
    %45 = vector.load %arg5[%c3, %c0_43, %c0_44] : memref<4x36x128xbf16, #tpu.memory_space<vmem>>, vector<1x36x128xbf16>
    %46 = vector.shape_cast %45 : vector<1x36x128xbf16> to vector<36x128xbf16>
    %cst_45 = arith.constant dense<0.000000e+00> : vector<8x128xf32>
    %47 = tpu.matmul %19, %46, %cst_45 {dimension_numbers = #tpu.dot_dimension_numbers<[1], [0], [0], [1], [0, 0, 1, 1], [], []>} : vector<8x36xbf16>, vector<36x128xbf16>, vector<8x128xf32> -> vector<8x128xf32>
    %48 = vector.broadcast %20 : vector<8x1xf32> to vector<8x128xf32>
    %49 = arith.addf %47, %48 : vector<8x128xf32>
    %c3_46 = arith.constant 3 : index
    %c0_47 = arith.constant 0 : index
    %c0_48 = arith.constant 0 : index
    %50 = vector.load %arg4[%c3_46, %c0_47, %c0_48] : memref<4x8x128xf32, #tpu.memory_space<vmem>>, vector<1x8x128xf32>
    %51 = vector.shape_cast %50 : vector<1x8x128xf32> to vector<8x128xf32>
    %52 = vector.shape_cast %49 : vector<8x128xf32> to vector<1x8x128xf32>
    tpu.vector_store %arg4[%c3_46, %c0_47, %c0_48], %52 {strides = array<i32>} : memref<4x8x128xf32, #tpu.memory_space<vmem>>, vector<1x8x128xf32>,
    return
  }
  func.func @transform_0(%arg0: i32) -> (i32, i32, i32) {
    %c0_i32 = arith.constant 0 : i32
    %c0_i32_0 = arith.constant 0 : i32
    %c0_i32_1 = arith.constant 0 : i32
    return %arg0, %c0_i32, %c0_i32_0 : i32, i32, i32
  }
  func.func @transform_1(%arg0: i32) -> (i32, i32) {
    %c0_i32 = arith.constant 0 : i32
    %c0_i32_0 = arith.constant 0 : i32
    %c0_i32_1 = arith.constant 0 : i32
    return %c0_i32, %c0_i32_0 : i32, i32
  }
  func.func @transform_2(%arg0: i32) -> (i32, i32) {
    %c0_i32 = arith.constant 0 : i32
    %c0_i32_0 = arith.constant 0 : i32
    %c0_i32_1 = arith.constant 0 : i32
    return %c0_i32, %c0_i32_0 : i32, i32
  }
  func.func @transform_3(%arg0: i32) -> (i32, i32, i32) {
    %c0_i32 = arith.constant 0 : i32
    %c0_i32_0 = arith.constant 0 : i32
    %c0_i32_1 = arith.constant 0 : i32
    return %arg0, %c0_i32, %c0_i32_0 : i32, i32, i32
  }
}

</mosaic_0001>

<llo_original>
// kernel: tpu_custom_call.1
$region0: #{tpu_custom_call.1}
  #allocation0 [shape = 'u32[]', space=smem, size = 0x4, offset = 0x4, fixed_abs, tag = 'smem constant byte address 0x4 - core index']
  #allocation1 [shape = 'u32[72,128]{1,0:T(1,128)}', space=vmem, size = 0x9000, scoped, tag = 'internal scratch']
  #allocation2 [shape = 'bf16[4,36,128]{2,1,0:T(8,128)(2,1)}', space=vmem, size = 0xa000, scoped, tag = 'scratch operand']
  %s0 = inlined_call_operand.hbm [shape: bf16[8,4,256], index: 0, kind: input, shape index: {}]
  %s1 = inlined_call_operand.vmem [shape: bf16[8,36], index: 1, kind: input, shape index: {}]
  %s2 = inlined_call_operand.vmem [shape: f32[8,1], index: 2, kind: input, shape index: {}]
  %s3 = inlined_call_operand.hbm [shape: f32[8,8,128], index: 3, kind: output, shape index: {}]
  %s4 = sld [smem:[#allocation0]]
  $region49: #{tpu_custom_call.1} parent=0
    _
  %s6 = ssub.s32 1, %s4
  %s7 = scalar_select 0, %s6, %s4
  $region1: #{tpu_custom_call.1} parent=0
    #allocation3 [shape = 'u8[16384]{0}', space=vmem, size = 0x4000, scoped, tag = 'input window, operand 0']
    #allocation4 [shape = 's32[2]{0}', space=sflag, size = 0x8, scoped, tag = 'scoped memory for tpu_custom_call.1']
    #allocation5 [shape = 's32[2]{0}', space=sflag, size = 0x8, scoped, tag = 'scoped memory for tpu_custom_call.1']
    #allocation6 [shape = 'u8[32768]{0}', space=vmem, size = 0x8000, scoped, tag = 'output window, operand 0']
    %8 = vsyncpa [#allocation4], 0
    %s9 = scalar_lea.sflag [#allocation4], 1
    %10 = vsyncpa %s9, 0
    %11 = vsyncpa [#allocation5], 0
    %s12 = scalar_lea.sflag [#allocation5], 1
    %13 = vsyncpa %s12, 0
    loop: start=0, step=1, limit=4
    $region2: #{tpu_custom_call.1} parent=1 // loop_pre_header
      _
    $region3: #{tpu_custom_call.1} parent=1 // loop_header
      %s15 = sphi 0, %s19
      %p16 = scmp.ge.s32.totalorder %s15, 4
      %s25 = sphi 0, %s27
      %s28 = sphi 0, %s25
      %s29 = sphi 0, %s28
      %s45 = sphi 0, %s29
      %s49 = sphi 0, %s49
      %s51 = sphi 0, %s49
      %s52 = sphi 0, %s51
      %s66 = sphi 0, %s52
      %s70 = sphi 0, %s70
      %s72 = sphi 0, %s70
      %s73 = sphi 0, %s72
      %s87 = sphi 0, %s73
      %s93 = sphi 0, %s95
      %s96 = sphi 0, %s93
      %s97 = sphi 0, %s96
      %s113 = sphi 0, %s97
    $region4: #{tpu_custom_call.1} parent=1 // loop_header_branch
      %18 = sbr.rel (%p16) target = $region8
    $region5: #{tpu_custom_call.1} parent=1 // loop_body
      %s20 = ssub.s32 %s15, 1
      %s21 = ssub.s32 %s15, 2
      %s22 = sadd.s32 %s15, 1
      %s23 = ssub.s32 %s15, %s22
      %p24 = scmp.eq.s32.totalorder %s23, 0
      %s26 = sadd.s32 %s25, 1
      %s27 = scalar_select %p24, %s25, %s26
      %p30 = pneg %p24
      %p31 = scmp.eq.s32.totalorder %s15, 1
      %p32 = por %p30, %p31
      %p33 = scmp.ne.s32.totalorder %s25, %s28
      %p34 = scmp.eq.s32.totalorder %s15, 0
      %p35 = por %p33, %p34
      %p36 = scmp.ne.s32.totalorder %s25, %s28
      %p37 = scmp.eq.s32.totalorder %s20, 1
      %p38 = por %p36, %p37
      %p39 = scmp.ne.s32.totalorder %s28, %s29
      %p40 = scmp.eq.s32.totalorder %s20, 0
      %p41 = por %p39, %p40
      %p42 = scmp.ne.s32.totalorder %s28, %s29
      %p43 = scmp.eq.s32.totalorder %s21, 1
      %p44 = por %p42, %p43
      %p46 = scmp.ne.s32.totalorder %s29, %s45
      %p47 = scmp.eq.s32.totalorder %s21, 0
      %p48 = por %p46, %p47
      %s50 = sadd.s32 %s49, 1
      %p53 = scmp.eq.s32.totalorder %s15, 1
      %p54 = scmp.ne.s32.totalorder %s49, %s51
      %p55 = scmp.eq.s32.totalorder %s15, 0
      %p56 = por %p54, %p55
      %p57 = scmp.ne.s32.totalorder %s49, %s51
      %p58 = scmp.eq.s32.totalorder %s20, 1
      %p59 = por %p57, %p58
      %p60 = scmp.ne.s32.totalorder %s51, %s52
      %p61 = scmp.eq.s32.totalorder %s20, 0
      %p62 = por %p60, %p61
      %p63 = scmp.ne.s32.totalorder %s51, %s52
      %p64 = scmp.eq.s32.totalorder %s21, 1
      %p65 = por %p63, %p64
      %p67 = scmp.ne.s32.totalorder %s52, %s66
      %p68 = scmp.eq.s32.totalorder %s21, 0
      %p69 = por %p67, %p68
      %s71 = sadd.s32 %s70, 1
      %p74 = scmp.eq.s32.totalorder %s15, 1
      %p75 = scmp.ne.s32.totalorder %s70, %s72
      %p76 = scmp.eq.s32.totalorder %s15, 0
      %p77 = por %p75, %p76
      %p78 = scmp.ne.s32.totalorder %s70, %s72
      %p79 = scmp.eq.s32.totalorder %s20, 1
      %p80 = por %p78, %p79
      %p81 = scmp.ne.s32.totalorder %s72, %s73
      %p82 = scmp.eq.s32.totalorder %s20, 0
      %p83 = por %p81, %p82
      %p84 = scmp.ne.s32.totalorder %s72, %s73
      %p85 = scmp.eq.s32.totalorder %s21, 1
      %p86 = por %p84, %p85
      %p88 = scmp.ne.s32.totalorder %s73, %s87
      %p89 = scmp.eq.s32.totalorder %s21, 0
      %p90 = por %p88, %p89
      %s91 = ssub.s32 %s15, %s22
      %p92 = scmp.eq.s32.totalorder %s91, 0
      %s94 = sadd.s32 %s93, 1
      %s95 = scalar_select %p92, %s93, %s94
      %p98 = pneg %p92
      %p99 = scmp.eq.s32.totalorder %s15, 1
      %p100 = por %p98, %p99
      %p101 = scmp.ne.s32.totalorder %s93, %s96
      %p102 = scmp.eq.s32.totalorder %s15, 0
      %p103 = por %p101, %p102
      %p104 = scmp.ne.s32.totalorder %s93, %s96
      %p105 = scmp.eq.s32.totalorder %s20, 1
      %p106 = por %p104, %p105
      %p107 = scmp.ne.s32.totalorder %s96, %s97
      %p108 = scmp.eq.s32.totalorder %s20, 0
      %p109 = por %p107, %p108
      %p110 = scmp.ne.s32.totalorder %s96, %s97
      %p111 = scmp.eq.s32.totalorder %s21, 1
      %p112 = por %p110, %p111
      %p114 = scmp.ne.s32.totalorder %s97, %s113
      %p115 = scmp.eq.s32.totalorder %s21, 0
      %p116 = por %p114, %p115
      %p117 = scmp.le.s32.totalorder 1, %s15
      %p118 = scmp.lt.s32.totalorder %s15, 3
      %p119 = pnand %p117, %p118
      %p120 = pneg %p119
      // Predicated region
      $region9: #{tpu_custom_call.1} parent=5 // pred_check
        _
      $region10: #{tpu_custom_call.1} parent=5 // pred_check_branch
        %122 = sbr.rel (%p119) target = $region12
      $region11: #{tpu_custom_call.1} parent=5 // pred_region
        %s123 = ssub.s32 %s15, 1
        // Predicated region
        $region13: #{tpu_custom_call.1} parent=11 // pred_check
          %p124 = pneg %p62
        $region14: #{tpu_custom_call.1} parent=11 // pred_check_branch
          %126 = sbr.rel (%p124) target = $region16
        $region15: #{tpu_custom_call.1} parent=11 // pred_region
          _
        $region16: #{tpu_custom_call.1} parent=11 // pred_fallthru
          _
        // Predicated region
        $region17: #{tpu_custom_call.1} parent=11 // pred_check
          %p127 = pneg %p83
        $region18: #{tpu_custom_call.1} parent=11 // pred_check_branch
          %129 = sbr.rel (%p127) target = $region20
        $region19: #{tpu_custom_call.1} parent=11 // pred_region
          _
        $region20: #{tpu_custom_call.1} parent=11 // pred_fallthru
          _
      $region12: #{tpu_custom_call.1} parent=5 // pred_fallthru
        _
      %p130 = scmp.lt.s32.totalorder %s15, 2
      // Predicated region
      $region21: #{tpu_custom_call.1} parent=5 // pred_check
        %p131 = pneg %p130
      $region22: #{tpu_custom_call.1} parent=5 // pred_check_branch
        %133 = sbr.rel (%p131) target = $region24
      $region23: #{tpu_custom_call.1} parent=5 // pred_region
        // Predicated region
        $region25: #{tpu_custom_call.1} parent=23 // pred_check
          %p134 = pneg %p35
        $region26: #{tpu_custom_call.1} parent=23 // pred_check_branch
          %136 = sbr.rel (%p134) target = $region28
        $region27: #{tpu_custom_call.1} parent=23 // pred_region
          %s137 = sand.u32 %s25, 1
          %s138 = scalar_lea.sflag [#allocation4], %s137
          %s139 = sand.u32 %s25, 1
          %s140 = smul.addr %s139, 16
          %s141 = scalar_lea.vmem [#allocation3], %s140
          %s142 = smul.u32 4, %s15
          %144 = vsyncadd %s138, 0
          %s145 = smul.addr %s142, 2
          %s146 = smul.addr %s145, 2
          %s147 = scalar_lea.hbm %s0, %s146
          %s148 = sshll.u32 %s147, 4
          %s149 = int_to_ptr.hbm [resolvable:$true] %s148
          %s150 = sshll.u32 %s141, 4
          %s151 = int_to_ptr.vmem [resolvable:$true] %s150
          %156 = dma.hbm_to_vmem [thread:$0]  %s149, 256, %s151, %s138, 64, 64, 4
        $region28: #{tpu_custom_call.1} parent=23 // pred_fallthru
          _
      $region24: #{tpu_custom_call.1} parent=5 // pred_fallthru
        _
      %p157 = scmp.le.s32.totalorder 1, %s15
      %p158 = scmp.lt.s32.totalorder %s15, 3
      %p159 = pnand %p157, %p158
      %p160 = pneg %p159
      // Predicated region
      $region29: #{tpu_custom_call.1} parent=5 // pred_check
        _
      $region30: #{tpu_custom_call.1} parent=5 // pred_check_branch
        %162 = sbr.rel (%p159) target = $region32
      $region31: #{tpu_custom_call.1} parent=5 // pred_region
        %s163 = ssub.s32 %s15, 1
        %s164 = sand.u32 %s28, 1
        %s165 = scalar_lea.sflag [#allocation4], %s164
        %s166 = sand.u32 %s28, 1
        %s167 = smul.addr %s166, 16
        %s168 = scalar_lea.vmem [#allocation3], %s167
        // Predicated region
        $region33: #{tpu_custom_call.1} parent=31 // pred_check
          %p169 = pneg %p41
        $region34: #{tpu_custom_call.1} parent=31 // pred_check_branch
          %171 = sbr.rel (%p169) target = $region36
        $region35: #{tpu_custom_call.1} parent=31 // pred_region
          %173 = dma.done %s165, 256
        $region36: #{tpu_custom_call.1} parent=31 // pred_fallthru
          _
        %s174 = sand.u32 %s28, 1
        %s175 = scalar_lea.sflag [#allocation4], %s174
        %s176 = sand.u32 %s28, 1
        %s177 = smul.addr %s176, 16
        %s178 = scalar_lea.vmem [#allocation3], %s177
        %p179 = pneg %p41
        %p180 = pneg %p38
        %p181 = pneg %p62
        %p182 = pneg %p59
        %p183 = pneg %p83
        %p184 = pneg %p80
        %p185 = pneg %p109
        %p186 = pneg %p106
        %s187 = sand.u32 %s96, 1
        %s188 = scalar_lea.sflag [#allocation5], %s187
        %s189 = sand.u32 %s96, 1
        %s190 = smul.addr %s189, 32
        %s191 = scalar_lea.vmem [#allocation6], %s190
        %s192 = smul.u32 4, %s20
        %s193 = smul.u32 4, %s20
        %v195 = vld [vmem:[%s168] sm:$0xf]
        %v196 = vld [vmem:[%s168 + $0x4] sm:$0xf]
        %v197 = vld [vmem:[%s168 + $0x8] sm:$0xf]
        %v198 = vld [vmem:[%s168 + $0xc] sm:$0xf]
        %199 = vst [vmem:[#allocation2] sm:$0x3] %v195
        %200 = vst [vmem:[#allocation2 + $0x14] sm:$0x3] %v196
        %201 = vst [vmem:[#allocation2 + $0x28] sm:$0x3] %v197
        %202 = vst [vmem:[#allocation2 + $0x3c] sm:$0x3] %v198
        %s204 = scalar_lea.vmem [#allocation1], 1
        %205 = vst [vmem:[%s204] ss:$2 sm:$0xff] %v195
        %v206 = vld.sshfl [vmem:[#allocation1] sm:$0xff pattern:$0x75643120]
        %s209 = scalar_lea.vmem [#allocation1], 17
        %210 = vst [vmem:[%s209] ss:$2 sm:$0xff] %v196
        %v211 = vld.sshfl [vmem:[#allocation1 + $0x10] sm:$0xff pattern:$0x75643120]
        %s214 = scalar_lea.vmem [#allocation1], 33
        %215 = vst [vmem:[%s214] ss:$2 sm:$0xff] %v197
        %v216 = vld.sshfl [vmem:[#allocation1 + $0x20] sm:$0xff pattern:$0x75643120]
        %s219 = scalar_lea.vmem [#allocation1], 49
        %220 = vst [vmem:[%s219] ss:$2 sm:$0xff] %v198
        %v221 = vld.sshfl [vmem:[#allocation1 + $0x30] sm:$0xff pattern:$0x75643120]
        %223 = vrot.lane.b32.xlu0 %v206, 127
        %v224 = vpop.permute.xlu0 %223
        %225 = vrot.lane.b32.xlu0 %v211, 127
        %v226 = vpop.permute.xlu0 %225
        %227 = vrot.lane.b32.xlu0 %v216, 127
        %v228 = vpop.permute.xlu0 %227
        %229 = vrot.lane.b32.xlu0 %v221, 127
        %v230 = vpop.permute.xlu0 %229
        %v231 = vrot.slane %v224, 4
        %v232 = vrot.slane %v226, 4
        %v233 = vrot.slane %v228, 4
        %v234 = vrot.slane %v230, 4
        %vm235 = vcmask 1039360
        %v236 = vsel %vm235, %v224, %v231
        %v237 = vsel %vm235, %v226, %v232
        %v238 = vsel %vm235, %v228, %v233
        %v239 = vsel %vm235, %v230, %v234
        %244 = vst [vmem:[#allocation2] sm:$0xc] %v236
        %245 = vst [vmem:[#allocation2 + $0x14] sm:$0xc] %v237
        %246 = vst [vmem:[#allocation2 + $0x28] sm:$0xc] %v238
        %247 = vst [vmem:[#allocation2 + $0x3c] sm:$0xc] %v239
        %248 = vst [vmem:[#allocation1] ss:$2 sm:$0xff] %v195
        %v249 = vld.sshfl [vmem:[#allocation1] sm:$0xff pattern:$0x75643120]
        %s251 = scalar_lea.vmem [#allocation1], 16
        %252 = vst [vmem:[%s251] ss:$2 sm:$0xff] %v196
        %v253 = vld.sshfl [vmem:[#allocation1 + $0x10] sm:$0xff pattern:$0x75643120]
        %s255 = scalar_lea.vmem [#allocation1], 32
        %256 = vst [vmem:[%s255] ss:$2 sm:$0xff] %v197
        %v257 = vld.sshfl [vmem:[#allocation1 + $0x20] sm:$0xff pattern:$0x75643120]
        %s259 = scalar_lea.vmem [#allocation1], 48
        %260 = vst [vmem:[%s259] ss:$2 sm:$0xff] %v198
        %v261 = vld.sshfl [vmem:[#allocation1 + $0x30] sm:$0xff pattern:$0x75643120]
        %263 = vrot.lane.b32.xlu0 %v249, 126
        %v264 = vpop.permute.xlu0 %263
        %265 = vrot.lane.b32.xlu0 %v253, 126
        %v266 = vpop.permute.xlu0 %265
        %267 = vrot.lane.b32.xlu0 %v257, 126
        %v268 = vpop.permute.xlu0 %267
        %269 = vrot.lane.b32.xlu0 %v261, 126
        %v270 = vpop.permute.xlu0 %269
        %v271 = vrot.slane %v264, 4
        %v272 = vrot.slane %v266, 4
        %v273 = vrot.slane %v268, 4
        %v274 = vrot.slane %v270, 4
        %vm275 = vcmask 1031168
        %v276 = vsel %vm275, %v264, %v271
        %v277 = vsel %vm275, %v266, %v272
        %v278 = vsel %vm275, %v268, %v273
        %v279 = vsel %vm275, %v270, %v274
        %284 = vst [vmem:[#allocation2 + $0x4] sm:$0x3] %v276
        %285 = vst [vmem:[#allocation2 + $0x18] sm:$0x3] %v277
        %286 = vst [vmem:[#allocation2 + $0x2c] sm:$0x3] %v278
        %287 = vst [vmem:[#allocation2 + $0x40] sm:$0x3] %v279
        %s288 = scalar_lea.vmem [#allocation1], 1
        %289 = vst [vmem:[%s288] ss:$2 sm:$0xff] %v195
        %v290 = vld.sshfl [vmem:[#allocation1] sm:$0xff pattern:$0x75643120]
        %s292 = scalar_lea.vmem [#allocation1], 17
        %293 = vst [vmem:[%s292] ss:$2 sm:$0xff] %v196
        %v294 = vld.sshfl [vmem:[#allocation1 + $0x10] sm:$0xff pattern:$0x75643120]
        %s296 = scalar_lea.vmem [#allocation1], 33
        %297 = vst [vmem:[%s296] ss:$2 sm:$0xff] %v197
        %v298 = vld.sshfl [vmem:[#allocation1 + $0x20] sm:$0xff pattern:$0x75643120]
        %s300 = scalar_lea.vmem [#allocation1], 49
        %301 = vst [vmem:[%s300] ss:$2 sm:$0xff] %v198
        %v302 = vld.sshfl [vmem:[#allocation1 + $0x30] sm:$0xff pattern:$0x75643120]
        %304 = vrot.lane.b32.xlu0 %v290, 118
        %v305 = vpop.permute.xlu0 %304
        %306 = vrot.lane.b32.xlu0 %v294, 118
        %v307 = vpop.permute.xlu0 %306
        %308 = vrot.lane.b32.xlu0 %v298, 118
        %v309 = vpop.permute.xlu0 %308
        %310 = vrot.lane.b32.xlu0 %v302, 118
        %v311 = vpop.permute.xlu0 %310
        %v312 = vrot.slane %v305, 4
        %v313 = vrot.slane %v307, 4
        %v314 = vrot.slane %v309, 4
        %v315 = vrot.slane %v311, 4
        %vm316 = vcmask 965632
        %v317 = vsel %vm316, %v305, %v312
        %v318 = vsel %vm316, %v307, %v313
        %v319 = vsel %vm316, %v309, %v314
        %v320 = vsel %vm316, %v311, %v315
        %325 = vst [vmem:[#allocation2 + $0x4] sm:$0xc] %v317
        %326 = vst [vmem:[#allocation2 + $0x18] sm:$0xc] %v318
        %327 = vst [vmem:[#allocation2 + $0x2c] sm:$0xc] %v319
        %328 = vst [vmem:[#allocation2 + $0x40] sm:$0xc] %v320
        %329 = vst [vmem:[#allocation1] ss:$2 sm:$0xff] %v195
        %v330 = vld.sshfl [vmem:[#allocation1] sm:$0xff pattern:$0x75643120]
        %s332 = scalar_lea.vmem [#allocation1], 16
        %333 = vst [vmem:[%s332] ss:$2 sm:$0xff] %v196
        %v334 = vld.sshfl [vmem:[#allocation1 + $0x10] sm:$0xff pattern:$0x75643120]
        %s336 = scalar_lea.vmem [#allocation1], 32
        %337 = vst [vmem:[%s336] ss:$2 sm:$0xff] %v197
        %v338 = vld.sshfl [vmem:[#allocation1 + $0x20] sm:$0xff pattern:$0x75643120]
        %s340 = scalar_lea.vmem [#allocation1], 48
        %341 = vst [vmem:[%s340] ss:$2 sm:$0xff] %v198
        %v342 = vld.sshfl [vmem:[#allocation1 + $0x30] sm:$0xff pattern:$0x75643120]
        %344 = vrot.lane.b32.xlu0 %v330, 117
        %v345 = vpop.permute.xlu0 %344
        %346 = vrot.lane.b32.xlu0 %v334, 117
        %v347 = vpop.permute.xlu0 %346
        %348 = vrot.lane.b32.xlu0 %v338, 117
        %v349 = vpop.permute.xlu0 %348
        %350 = vrot.lane.b32.xlu0 %v342, 117
        %v351 = vpop.permute.xlu0 %350
        %v352 = vrot.slane %v345, 4
        %v353 = vrot.slane %v347, 4
        %v354 = vrot.slane %v349, 4
        %v355 = vrot.slane %v351, 4
        %vm356 = vcmask 957440
        %v357 = vsel %vm356, %v345, %v352
        %v358 = vsel %vm356, %v347, %v353
        %v359 = vsel %vm356, %v349, %v354
        %v360 = vsel %vm356, %v351, %v355
        %365 = vst [vmem:[#allocation2 + $0x8] sm:$0x3] %v357
        %366 = vst [vmem:[#allocation2 + $0x1c] sm:$0x3] %v358
        %367 = vst [vmem:[#allocation2 + $0x30] sm:$0x3] %v359
        %368 = vst [vmem:[#allocation2 + $0x44] sm:$0x3] %v360
        %s369 = scalar_lea.vmem [#allocation1], 1
        %370 = vst [vmem:[%s369] ss:$2 sm:$0xff] %v195
        %v371 = vld.sshfl [vmem:[#allocation1] sm:$0xff pattern:$0x75643120]
        %s373 = scalar_lea.vmem [#allocation1], 17
        %374 = vst [vmem:[%s373] ss:$2 sm:$0xff] %v196
        %v375 = vld.sshfl [vmem:[#allocation1 + $0x10] sm:$0xff pattern:$0x75643120]
        %s377 = scalar_lea.vmem [#allocation1], 33
        %378 = vst [vmem:[%s377] ss:$2 sm:$0xff] %v197
        %v379 = vld.sshfl [vmem:[#allocation1 + $0x20] sm:$0xff pattern:$0x75643120]
        %s381 = scalar_lea.vmem [#allocation1], 49
        %382 = vst [vmem:[%s381] ss:$2 sm:$0xff] %v198
        %v383 = vld.sshfl [vmem:[#allocation1 + $0x30] sm:$0xff pattern:$0x75643120]
        %385 = vrot.lane.b32.xlu0 %v371, 116
        %v386 = vpop.permute.xlu0 %385
        %387 = vrot.lane.b32.xlu0 %v375, 116
        %v388 = vpop.permute.xlu0 %387
        %389 = vrot.lane.b32.xlu0 %v379, 116
        %v390 = vpop.permute.xlu0 %389
        %391 = vrot.lane.b32.xlu0 %v383, 116
        %v392 = vpop.permute.xlu0 %391
        %v393 = vrot.slane %v386, 4
        %v394 = vrot.slane %v388, 4
        %v395 = vrot.slane %v390, 4
        %v396 = vrot.slane %v392, 4
        %vm397 = vcmask 949248
        %v398 = vsel %vm397, %v386, %v393
        %v399 = vsel %vm397, %v388, %v394
        %v400 = vsel %vm397, %v390, %v395
        %v401 = vsel %vm397, %v392, %v396
        %406 = vst [vmem:[#allocation2 + $0x8] sm:$0xc] %v398
        %407 = vst [vmem:[#allocation2 + $0x1c] sm:$0xc] %v399
        %408 = vst [vmem:[#allocation2 + $0x30] sm:$0xc] %v400
        %409 = vst [vmem:[#allocation2 + $0x44] sm:$0xc] %v401
        %410 = vst [vmem:[#allocation1] ss:$2 sm:$0xff] %v195
        %v411 = vld.sshfl [vmem:[#allocation1] sm:$0xff pattern:$0x75643120]
        %s413 = scalar_lea.vmem [#allocation1], 16
        %414 = vst [vmem:[%s413] ss:$2 sm:$0xff] %v196
        %v415 = vld.sshfl [vmem:[#allocation1 + $0x10] sm:$0xff pattern:$0x75643120]
        %s417 = scalar_lea.vmem [#allocation1], 32
        %418 = vst [vmem:[%s417] ss:$2 sm:$0xff] %v197
        %v419 = vld.sshfl [vmem:[#allocation1 + $0x20] sm:$0xff pattern:$0x75643120]
        %s421 = scalar_lea.vmem [#allocation1], 48
        %422 = vst [vmem:[%s421] ss:$2 sm:$0xff] %v198
        %v423 = vld.sshfl [vmem:[#allocation1 + $0x30] sm:$0xff pattern:$0x75643120]
        %425 = vrot.lane.b32.xlu0 %v411, 108
        %v426 = vpop.permute.xlu0 %425
        %427 = vrot.lane.b32.xlu0 %v415, 108
        %v428 = vpop.permute.xlu0 %427
        %429 = vrot.lane.b32.xlu0 %v419, 108
        %v430 = vpop.permute.xlu0 %429
        %431 = vrot.lane.b32.xlu0 %v423, 108
        %v432 = vpop.permute.xlu0 %431
        %v433 = vrot.slane %v426, 4
        %v434 = vrot.slane %v428, 4
        %v435 = vrot.slane %v430, 4
        %v436 = vrot.slane %v432, 4
        %vm437 = vcmask 883712
        %v438 = vsel %vm437, %v426, %v433
        %v439 = vsel %vm437, %v428, %v434
        %v440 = vsel %vm437, %v430, %v435
        %v441 = vsel %vm437, %v432, %v436
        %446 = vst [vmem:[#allocation2 + $0xc] sm:$0x3] %v438
        %447 = vst [vmem:[#allocation2 + $0x20] sm:$0x3] %v439
        %448 = vst [vmem:[#allocation2 + $0x34] sm:$0x3] %v440
        %449 = vst [vmem:[#allocation2 + $0x48] sm:$0x3] %v441
        %s450 = scalar_lea.vmem [#allocation1], 1
        %451 = vst [vmem:[%s450] ss:$2 sm:$0xff] %v195
        %v452 = vld.sshfl [vmem:[#allocation1] sm:$0xff pattern:$0x75643120]
        %s454 = scalar_lea.vmem [#allocation1], 17
        %455 = vst [vmem:[%s454] ss:$2 sm:$0xff] %v196
        %v456 = vld.sshfl [vmem:[#allocation1 + $0x10] sm:$0xff pattern:$0x75643120]
        %s458 = scalar_lea.vmem [#allocation1], 33
        %459 = vst [vmem:[%s458] ss:$2 sm:$0xff] %v197
        %v460 = vld.sshfl [vmem:[#allocation1 + $0x20] sm:$0xff pattern:$0x75643120]
        %s462 = scalar_lea.vmem [#allocation1], 49
        %463 = vst [vmem:[%s462] ss:$2 sm:$0xff] %v198
        %v464 = vld.sshfl [vmem:[#allocation1 + $0x30] sm:$0xff pattern:$0x75643120]
        %466 = vrot.lane.b32.xlu0 %v452, 107
        %v467 = vpop.permute.xlu0 %466
        %468 = vrot.lane.b32.xlu0 %v456, 107
        %v469 = vpop.permute.xlu0 %468
        %470 = vrot.lane.b32.xlu0 %v460, 107
        %v471 = vpop.permute.xlu0 %470
        %472 = vrot.lane.b32.xlu0 %v464, 107
        %v473 = vpop.permute.xlu0 %472
        %v474 = vrot.slane %v467, 4
        %v475 = vrot.slane %v469, 4
        %v476 = vrot.slane %v471, 4
        %v477 = vrot.slane %v473, 4
        %vm478 = vcmask 875520
        %v479 = vsel %vm478, %v467, %v474
        %v480 = vsel %vm478, %v469, %v475
        %v481 = vsel %vm478, %v471, %v476
        %v482 = vsel %vm478, %v473, %v477
        %487 = vst [vmem:[#allocation2 + $0xc] sm:$0xc] %v479
        %488 = vst [vmem:[#allocation2 + $0x20] sm:$0xc] %v480
        %489 = vst [vmem:[#allocation2 + $0x34] sm:$0xc] %v481
        %490 = vst [vmem:[#allocation2 + $0x48] sm:$0xc] %v482
        %491 = vst [vmem:[#allocation1] ss:$2 sm:$0xff] %v195
        %v492 = vld.sshfl [vmem:[#allocation1] sm:$0xff pattern:$0x75643120]
        %s494 = scalar_lea.vmem [#allocation1], 16
        %495 = vst [vmem:[%s494] ss:$2 sm:$0xff] %v196
        %v496 = vld.sshfl [vmem:[#allocation1 + $0x10] sm:$0xff pattern:$0x75643120]
        %s498 = scalar_lea.vmem [#allocation1], 32
        %499 = vst [vmem:[%s498] ss:$2 sm:$0xff] %v197
        %v500 = vld.sshfl [vmem:[#allocation1 + $0x20] sm:$0xff pattern:$0x75643120]
        %s502 = scalar_lea.vmem [#allocation1], 48
        %503 = vst [vmem:[%s502] ss:$2 sm:$0xff] %v198
        %v504 = vld.sshfl [vmem:[#allocation1 + $0x30] sm:$0xff pattern:$0x75643120]
        %506 = vrot.lane.b32.xlu0 %v492, 106
        %v507 = vpop.permute.xlu0 %506
        %508 = vrot.lane.b32.xlu0 %v496, 106
        %v509 = vpop.permute.xlu0 %508
        %510 = vrot.lane.b32.xlu0 %v500, 106
        %v511 = vpop.permute.xlu0 %510
        %512 = vrot.lane.b32.xlu0 %v504, 106
        %v513 = vpop.permute.xlu0 %512
        %v514 = vrot.slane %v507, 4
        %v515 = vrot.slane %v509, 4
        %v516 = vrot.slane %v511, 4
        %v517 = vrot.slane %v513, 4
        %vm518 = vcmask 867328
        %v519 = vsel %vm518, %v507, %v514
        %v520 = vsel %vm518, %v509, %v515
        %v521 = vsel %vm518, %v511, %v516
        %v522 = vsel %vm518, %v513, %v517
        %527 = vst [vmem:[#allocation2 + $0x10] sm:$0x3] %v519
        %528 = vst [vmem:[#allocation2 + $0x24] sm:$0x3] %v520
        %529 = vst [vmem:[#allocation2 + $0x38] sm:$0x3] %v521
        %530 = vst [vmem:[#allocation2 + $0x4c] sm:$0x3] %v522
        %v531 = vld [vmem:[%s1] sm:$0xf]
        %v532 = vld [vmem:[%s2] sm:$0xff]
        %v533 = vld [vmem:[#allocation2] sm:$0xf]
        %v534 = vld [vmem:[#allocation2 + $0x4] sm:$0xf]
        %v535 = vld [vmem:[#allocation2 + $0x8] sm:$0xf]
        %v536 = vld [vmem:[#allocation2 + $0xc] sm:$0xf]
        %v537 = vld [vmem:[#allocation2 + $0x10] sm:$0x3]
        %539 = vset.pattern.permute.xlu0 0
        %540 = vperm.xlu0 %539, %v532
        %v541 = vpop.permute.xlu0 %540
        %v548 = vunpack.c.l.b16 %v533
        %v549 = vunpack.c.l.b16 %v534
        %v550 = vunpack.c.l.b16 %v535
        %v551 = vunpack.c.l.b16 %v536
        %v552 = vunpack.c.l.b16 %v537
        %v553 = vpack.c.b16 %v549, %v548
        %v554 = vpack.c.b16 %v551, %v550
        %v555 = vpack.c.b16 %v552, %v552
        %vm558 = vcmask 293888
        %v560 = vsel %vm558, %v531, 0
        %vm562 = vcmask 1041408
        %v564 = vsel %vm562, %v555, 0
        %566 = vmatpush.bf16.msra.mxu0 0
        %567 = vmatpush.bf16.msra.mxu0 0
        %568 = vmatpush.bf16.msra.mxu0 0
        %569 = vmatpush.bf16.msra.mxu0 0
        %570 = vmatpush.bf16.msra.mxu0 0
        %571 = vmatpush.bf16.msra.mxu0 %v564
        %572 = vmatpush.bf16.msra.mxu0 %v554
        %573 = vmatpush.bf16.msra.mxu0 %v553
        %574 = vmatmul.bf16.gmra.mxu0 %v560
        %v575 = vpop.f32.mrf.mxu0
        %v576 = vadd.f32 %v541, %v575
        %v577 = vpop.f32.mrf.mxu0
        %578 = vdwg.mxu0
        %579 = vst [vmem:[%s191] sm:$0xff] %v576
        %s580 = scalar_lea.vmem [#allocation2], 20
        %v581 = vld [vmem:[%s580] sm:$0xf]
        %v582 = vld [vmem:[%s580 + $0x4] sm:$0xf]
        %v583 = vld [vmem:[%s580 + $0x8] sm:$0xf]
        %v584 = vld [vmem:[%s580 + $0xc] sm:$0xf]
        %v585 = vld [vmem:[%s580 + $0x10] sm:$0x3]
        %v591 = vunpack.c.l.b16 %v581
        %v592 = vunpack.c.l.b16 %v582
        %v593 = vunpack.c.l.b16 %v583
        %v594 = vunpack.c.l.b16 %v584
        %v595 = vunpack.c.l.b16 %v585
        %v596 = vpack.c.b16 %v592, %v591
        %v597 = vpack.c.b16 %v594, %v593
        %v598 = vpack.c.b16 %v595, %v595
        %v602 = vsel %vm562, %v598, 0
        %604 = vmatpush.bf16.msra.mxu0 0
        %605 = vmatpush.bf16.msra.mxu0 0
        %606 = vmatpush.bf16.msra.mxu0 0
        %607 = vmatpush.bf16.msra.mxu0 0
        %608 = vmatpush.bf16.msra.mxu0 0
        %609 = vmatpush.bf16.msra.mxu0 %v602
        %610 = vmatpush.bf16.msra.mxu0 %v597
        %611 = vmatpush.bf16.msra.mxu0 %v596
        %612 = vmatmul.bf16.gmra.mxu0 %v560
        %v613 = vpop.f32.mrf.mxu0
        %v614 = vadd.f32 %v541, %v613
        %v615 = vpop.f32.mrf.mxu0
        %616 = vdwg.mxu0
        %s617 = scalar_lea.vmem %s191, 8 [#allocation6]
        %618 = vst [vmem:[%s617] sm:$0xff] %v614
        %s619 = scalar_lea.vmem [#allocation2], 40
        %v620 = vld [vmem:[%s619] sm:$0xf]
        %v621 = vld [vmem:[%s619 + $0x4] sm:$0xf]
        %v622 = vld [vmem:[%s619 + $0x8] sm:$0xf]
        %v623 = vld [vmem:[%s619 + $0xc] sm:$0xf]
        %v624 = vld [vmem:[%s619 + $0x10] sm:$0x3]
        %v630 = vunpack.c.l.b16 %v620
        %v631 = vunpack.c.l.b16 %v621
        %v632 = vunpack.c.l.b16 %v622
        %v633 = vunpack.c.l.b16 %v623
        %v634 = vunpack.c.l.b16 %v624
        %v635 = vpack.c.b16 %v631, %v630
        %v636 = vpack.c.b16 %v633, %v632
        %v637 = vpack.c.b16 %v634, %v634
        %v641 = vsel %vm562, %v637, 0
        %643 = vmatpush.bf16.msra.mxu0 0
        %644 = vmatpush.bf16.msra.mxu0 0
        %645 = vmatpush.bf16.msra.mxu0 0
        %646 = vmatpush.bf16.msra.mxu0 0
        %647 = vmatpush.bf16.msra.mxu0 0
        %648 = vmatpush.bf16.msra.mxu0 %v641
        %649 = vmatpush.bf16.msra.mxu0 %v636
        %650 = vmatpush.bf16.msra.mxu0 %v635
        %651 = vmatmul.bf16.gmra.mxu0 %v560
        %v652 = vpop.f32.mrf.mxu0
        %v653 = vadd.f32 %v541, %v652
        %v654 = vpop.f32.mrf.mxu0
        %655 = vdwg.mxu0
        %s656 = scalar_lea.vmem %s191, 16 [#allocation6]
        %657 = vst [vmem:[%s656] sm:$0xff] %v653
        %s658 = scalar_lea.vmem [#allocation2], 60
        %v659 = vld [vmem:[%s658] sm:$0xf]
        %v660 = vld [vmem:[%s658 + $0x4] sm:$0xf]
        %v661 = vld [vmem:[%s658 + $0x8] sm:$0xf]
        %v662 = vld [vmem:[%s658 + $0xc] sm:$0xf]
        %v663 = vld [vmem:[%s658 + $0x10] sm:$0x3]
        %v669 = vunpack.c.l.b16 %v659
        %v670 = vunpack.c.l.b16 %v660
        %v671 = vunpack.c.l.b16 %v661
        %v672 = vunpack.c.l.b16 %v662
        %v673 = vunpack.c.l.b16 %v663
        %v674 = vpack.c.b16 %v670, %v669
        %v675 = vpack.c.b16 %v672, %v671
        %v676 = vpack.c.b16 %v673, %v673
        %v680 = vsel %vm562, %v676, 0
        %682 = vmatpush.bf16.msra.mxu0 0
        %683 = vmatpush.bf16.msra.mxu0 0
        %684 = vmatpush.bf16.msra.mxu0 0
        %685 = vmatpush.bf16.msra.mxu0 0
        %686 = vmatpush.bf16.msra.mxu0 0
        %687 = vmatpush.bf16.msra.mxu0 %v680
        %688 = vmatpush.bf16.msra.mxu0 %v675
        %689 = vmatpush.bf16.msra.mxu0 %v674
        %690 = vmatmul.bf16.gmra.mxu0 %v560
        %v691 = vpop.f32.mrf.mxu0
        %v692 = vadd.f32 %v541, %v691
        %v693 = vpop.f32.mrf.mxu0
        %694 = vdwg.mxu0
        %s695 = scalar_lea.vmem %s191, 24 [#allocation6]
        %696 = vst [vmem:[%s695] sm:$0xff] %v692
        %s697 = sand.u32 %s96, 1
        %s698 = scalar_lea.sflag [#allocation5], %s697
        %s699 = sand.u32 %s96, 1
        %s700 = smul.addr %s699, 32
        %s701 = scalar_lea.vmem [#allocation6], %s700
        // Predicated region
        $region37: #{tpu_custom_call.1} parent=31 // pred_check
          %p702 = pneg %p106
        $region38: #{tpu_custom_call.1} parent=31 // pred_check_branch
          %704 = sbr.rel (%p702) target = $region40
        $region39: #{tpu_custom_call.1} parent=31 // pred_region
          %s705 = smul.u32 4, %s20
          %707 = vsyncadd %s698, 0
          %s708 = smul.addr %s705, 8
          %s709 = scalar_lea.hbm %s3, %s708
          %s710 = sshll.u32 %s701, 4
          %s711 = int_to_ptr.vmem [resolvable:$true] %s710
          %s712 = sshll.u32 %s709, 4
          %s713 = int_to_ptr.hbm [resolvable:$true] %s712
          %718 = dma.vmem_to_hbm [thread:$0]  %s711, 512, %s713, %s698, 128, 128, 8
        $region40: #{tpu_custom_call.1} parent=31 // pred_fallthru
          _
      $region32: #{tpu_custom_call.1} parent=5 // pred_fallthru
        _
      %p719 = scmp.le.s32.totalorder 2, %s15
      // Predicated region
      $region41: #{tpu_custom_call.1} parent=5 // pred_check
        %p720 = pneg %p719
      $region42: #{tpu_custom_call.1} parent=5 // pred_check_branch
        %722 = sbr.rel (%p720) target = $region44
      $region43: #{tpu_custom_call.1} parent=5 // pred_region
        %s723 = ssub.s32 %s15, 2
        // Predicated region
        $region45: #{tpu_custom_call.1} parent=43 // pred_check
          %p724 = pneg %p112
        $region46: #{tpu_custom_call.1} parent=43 // pred_check_branch
          %726 = sbr.rel (%p724) target = $region48
        $region47: #{tpu_custom_call.1} parent=43 // pred_region
          %s727 = sand.u32 %s97, 1
          %s728 = scalar_lea.sflag [#allocation5], %s727
          %s729 = sand.u32 %s97, 1
          %s730 = smul.addr %s729, 32
          %s731 = scalar_lea.vmem [#allocation6], %s730
          %733 = dma.done %s728, 512
        $region48: #{tpu_custom_call.1} parent=43 // pred_fallthru
          _
      $region44: #{tpu_custom_call.1} parent=5 // pred_fallthru
        _
    $region6: #{tpu_custom_call.1} parent=1 // loop_footer
      %s19 = sadd.s32 1, %s15
    $region7: #{tpu_custom_call.1} parent=1 // loop_footer_branch
      %14 = sbr.rel target = $region3
    $region8: #{tpu_custom_call.1} parent=1 // loop_exit
      _
    %734 = vsyncpa [#allocation4], 1
    %s735 = scalar_lea.sflag [#allocation4], 1
    %736 = vsyncpa %s735, 1
    %737 = vsyncpa [#allocation5], 1
    %s738 = scalar_lea.sflag [#allocation5], 1
    %739 = vsyncpa %s738, 1

</llo_original>
